<compile_context>
chip_gen: v7x
topology: tpu7x:2x2x1
jax: 0.10.0
libtpu: 0.0.40
codegen_flags: <defaults>
</compile_context>

<pallas_src>
import functools

import jax
import jax.numpy as jnp
from jax.experimental import pallas as pl
from jax.experimental.pallas import tpu as pltpu


NEG_MASK = -1e30  # large finite negative for padded class lanes (no -inf / NaN hazard)


def _round_up(v, m):
    return (v + m - 1) // m * m


# ---------------------------------------------------------------------------
# Fused Pallas kernel: conv1(K=2) + ReLU + (eval) dropout + conv2(K=2) + log_softmax.
# All static sizes are recovered from the Ref shapes.
# ---------------------------------------------------------------------------
def _chebnet_fused_kernel(x_ref, l_ref, w1_ref, w2_ref, b_ref, o_ref):
    fin = x_ref.shape[1]
    h_pad = w1_ref.shape[1]
    c_pad = w2_ref.shape[1]

    lhat = l_ref[...]                              # (N, N)   bf16
    xb = x_ref[...].astype(jnp.bfloat16)           # f32 -> bf16 on the VPU (keeps the cast
                                                   # out of the XLA wrapper; x DMA stays f32)
    b = b_ref[...]                                 # (2, pad) f32: row0 = b1, row1 = b2 (+mask)

    # ---- ChebConv-1 (K=2): h = relu(x @ W0 + (L @ x) @ W1 + b1) ----
    # Row-stacked weights [[W0];[W1]]; expanded as two K=fin dots on tile-aligned row
    # slices of w1 (identical MACs to the [x ‖ Lx] concat, avoids an unaligned concat).
    w1 = w1_ref[...]                               # (2*fin, h_pad) bf16
    lx = jnp.dot(lhat, xb, preferred_element_type=jnp.float32)          # (N, fin)  f32
    h = (jnp.dot(xb, w1[:fin, :], preferred_element_type=jnp.float32)
         + jnp.dot(lx.astype(jnp.bfloat16), w1[fin:, :],
                   preferred_element_type=jnp.float32)
         + b[0:1, :h_pad])
    h = jnp.maximum(h, 0.0)                        # f32 epilogue (v5e has no bf16 VPU/EUP)
    # Padded hidden lanes stay exactly 0 (zero-padded weights/bias) -> inert in layer 2.

    # F.dropout(training=False) is the identity in eval mode.
    # TODO(synk): training-mode dropout (pltpu.prng_seed / prng_random_bits) not implemented.

    # ---- ChebConv-2 (K=2): logits = h @ W2_0 + (L @ h) @ W2_1 + b2 ----
    hb = h.astype(jnp.bfloat16)
    lh = jnp.dot(lhat, hb, preferred_element_type=jnp.float32)          # (N, h_pad) f32
    ha = jnp.concatenate([hb, lh.astype(jnp.bfloat16)], axis=-1)        # (N, 2*h_pad), 128-lane halves
    logits = (jnp.dot(ha, w2_ref[...], preferred_element_type=jnp.float32)
              + b[1:2, :c_pad])                    # (N, c_pad) f32
    # Padded class lanes already hold NEG_MASK via the packed bias row -> no in-kernel
    # iota/where mask and no -inf in the output slab.

    # log_softmax over the class axis (dim=1).
    m = jnp.max(logits, axis=1, keepdims=True)
    shifted = logits - m
    lse = jnp.log(jnp.sum(jnp.exp(shifted), axis=1, keepdims=True))
    o_ref[...] = (shifted - lse).astype(o_ref.dtype)   # lane-dense (N, c_pad) store


# ---------------------------------------------------------------------------
# One-time parameter / graph-operator packing (hoisted out of the forward path).
# ---------------------------------------------------------------------------
def prepare_chebnet(params, lhat):
    """Pack ChebNet weights + dense scaled Laplacian for the fused kernel.

    Call ONCE per (graph, parameters).  Everything here (padding, row-stacking, bf16
    casts, the class-lane mask baked into the b2 row) is static w.r.t. the forward pass,
    so the per-call jitted forward contains essentially only the pallas_call.
    """
    fin, hidden = params["w1_0"].shape
    num_classes = params["w2_0"].shape[1]
    h_pad = _round_up(max(hidden, 128), 128)       # lane-dense hidden width
    c_pad = _round_up(max(num_classes, 128), 128)  # lane-dense class width

    def pad_to(a, rows, cols):
        return jnp.pad(a, ((0, rows - a.shape[0]), (0, cols - a.shape[1])))

    # Row-stacked Chebyshev weights: [[W0]; [W1]] per layer.
    w1_stack = jnp.concatenate([pad_to(params["w1_0"], fin, h_pad),
                                pad_to(params["w1_1"], fin, h_pad)], axis=0)    # (2*fin, h_pad)
    w2_stack = jnp.concatenate([pad_to(params["w2_0"], h_pad, c_pad),
                                pad_to(params["w2_1"], h_pad, c_pad)], axis=0)  # (2*h_pad, c_pad)

    # Both biases in ONE (2, width) f32 input (one DMA descriptor); the padded class lanes
    # of the b2 row carry NEG_MASK so log_softmax padding costs nothing in-kernel.
    b_width = max(h_pad, c_pad)
    b1 = pad_to(params["b1"].astype(jnp.float32), 1, b_width)
    b2 = jnp.full((1, b_width), NEG_MASK, jnp.float32)
    b2 = b2.at[:, :num_classes].set(params["b2"].astype(jnp.float32)[:, :num_classes])
    b_packed = jnp.concatenate([b1, b2], axis=0)                                # (2, b_width)

    return {
        "lhat": lhat.astype(jnp.bfloat16),          # graph operator, bf16 MXU operand
        "w1_stack": w1_stack.astype(jnp.bfloat16),
        "w2_stack": w2_stack.astype(jnp.bfloat16),
        "b_packed": b_packed,
    }


@functools.partial(jax.jit, static_argnames=("num_classes", "return_padded"))
def chebnet_forward(x, prepared, *, num_classes, return_padded=False):
    """ChebNet forward (eval mode): one fused Pallas call over pre-packed operands."""
    n, _ = x.shape
    lhat = prepared["lhat"]
    w1 = prepared["w1_stack"]
    w2 = prepared["w2_stack"]
    b = prepared["b_packed"]
    c_pad = w2.shape[1]

    # TODO(synk): at this size (N=128) a gridless single-tile call is launch-latency bound
    # and optimal.  For N in the thousands, tile L_hat rows with a (row, reduction) grid
    # (reduction axis last / "arbitrary", row axis "parallel" so v7x's 2 TensorCores split
    # it) and budget VMEM against v7x's 64 MiB (single-block bf16 L_hat caps out ~N=4K).
    out_pad = pl.pallas_call(
        _chebnet_fused_kernel,
        out_shape=jax.ShapeDtypeStruct((n, c_pad), jnp.float32),
        in_specs=[
            pl.BlockSpec(x.shape, lambda: (0, 0)),
            pl.BlockSpec(lhat.shape, lambda: (0, 0)),
            pl.BlockSpec(w1.shape, lambda: (0, 0)),
            pl.BlockSpec(w2.shape, lambda: (0, 0)),
            pl.BlockSpec(b.shape, lambda: (0, 0)),
        ],
        out_specs=pl.BlockSpec((n, c_pad), lambda: (0, 0)),
        # ~0.4 MiB actual footprint; 4 MiB leaves headroom without hogging VMEM (v7x: 64 MiB/core).
        compiler_params=pltpu.CompilerParams(vmem_limit_bytes=4 * 1024 * 1024),
    )(x, lhat, w1, w2, b)

    if return_padded:
        return out_pad            # (N, c_pad) slab; padded lanes hold a large finite negative
    return out_pad[:, :num_classes]


# ---------------------------------------------------------------------------
# Glue: graph -> dense scaled Laplacian, deterministic parameter init, f32 reference.
# ---------------------------------------------------------------------------
def build_scaled_laplacian(edge_index, num_nodes):
    """L_hat = -D^{-1/2} A D^{-1/2} (PyG ChebConv, sym norm, lambda_max=2)."""
    src, dst = edge_index
    adj = jnp.zeros((num_nodes, num_nodes), jnp.float32)
    adj = adj.at[src, dst].set(1.0)
    adj = jnp.maximum(adj, adj.T)  # symmetrize
    deg = adj.sum(axis=1)
    dinv_sqrt = jnp.where(deg > 0, 1.0 / jnp.sqrt(jnp.maximum(deg, 1e-12)), 0.0)
    return -(dinv_sqrt[:, None] * adj * dinv_sqrt[None, :])


def glorot(key, shape):
    fan_in, fan_out = shape
    limit = jnp.sqrt(6.0 / (fan_in + fan_out))
    return jax.random.uniform(key, shape, jnp.float32, -limit, limit)


def chebnet_reference(x, lhat, params):
    """Pure-JAX f32 reference of the same forward pass."""
    h = jnp.maximum(x @ params["w1_0"] + (lhat @ x) @ params["w1_1"] + params["b1"], 0.0)
    z = h @ params["w2_0"] + (lhat @ h) @ params["w2_1"] + params["b2"]
    return jax.nn.log_softmax(z, axis=1)


if __name__ == "__main__":
    key = jax.random.PRNGKey(0)
    k_x, k_e, k1, k2, k3, k4 = jax.random.split(key, 6)

    num_nodes = 128
    num_node_features = 16
    hidden = 32          # ChebNet hard-codes 32 hidden channels
    num_classes = 8
    num_edges = 512

    # deterministic synthetic graph + node features
    x = jax.random.normal(k_x, (num_nodes, num_node_features), jnp.float32)
    edge_index = jax.random.randint(k_e, (2, num_edges), 0, num_nodes, jnp.int32)
    lhat = build_scaled_laplacian(edge_index, num_nodes)

    # ChebConv(in, out, K=2): two weight matrices (glorot) + zero bias per layer
    params = {
        "w1_0": glorot(k1, (num_node_features, hidden)),
        "w1_1": glorot(k2, (num_node_features, hidden)),
        "b1": jnp.zeros((1, hidden), jnp.float32),
        "w2_0": glorot(k3, (hidden, num_classes)),
        "w2_1": glorot(k4, (hidden, num_classes)),
        "b2": jnp.zeros((1, num_classes), jnp.float32),
    }

    # One-time packing: all padding / row-stacking / bf16 casts happen here, NOT per call.
    prepared = jax.tree_util.tree_map(jax.block_until_ready, prepare_chebnet(params, lhat))

    out = chebnet_forward(x, prepared, num_classes=num_classes)
    jax.block_until_ready(out)

    # sanity: shape, rows of log_softmax exp-sum to 1, agreement with the f32 reference
    # (loose tolerance since the MXU operands are bf16).
    assert out.shape == (num_nodes, num_classes)
    row_sums = jnp.exp(out).sum(axis=1)
    assert bool(jnp.allclose(row_sums, 1.0, atol=1e-4))
    ref = chebnet_reference(x, lhat, params)
    assert bool(jnp.allclose(out, ref, atol=0.2, rtol=0.0)), float(jnp.max(jnp.abs(out - ref)))

    print("KERNEL_OK")
</pallas_src>

<mosaic_0001>
module attributes {stable_mosaic.version = 11 : i64} {
  func.func @_chebnet_fused_kernel(%arg0: memref<128x16xf32, #tpu.memory_space<vmem>>, %arg1: memref<128x128xbf16, #tpu.memory_space<vmem>>, %arg2: memref<32x128xbf16, #tpu.memory_space<vmem>>, %arg3: memref<256x128xbf16, #tpu.memory_space<vmem>>, %arg4: memref<2x128xf32, #tpu.memory_space<vmem>>, %arg5: memref<128x128xf32, #tpu.memory_space<vmem>>) attributes {dimension_semantics = [], scalar_prefetch = 0 : i64, scratch_operands = 0 : i64, tpu.core_type = #tpu.core_type<tc>} {
    %c0 = arith.constant 0 : index
    %c0_0 = arith.constant 0 : index
    %0 = vector.load %arg1[%c0, %c0_0] : memref<128x128xbf16, #tpu.memory_space<vmem>>, vector<128x128xbf16>
    %c0_1 = arith.constant 0 : index
    %c0_2 = arith.constant 0 : index
    %1 = vector.load %arg0[%c0_1, %c0_2] : memref<128x16xf32, #tpu.memory_space<vmem>>, vector<128x16xf32>
    %2 = arith.truncf %1 : vector<128x16xf32> to vector<128x16xbf16>
    %c0_3 = arith.constant 0 : index
    %c0_4 = arith.constant 0 : index
    %3 = vector.load %arg4[%c0_3, %c0_4] : memref<2x128xf32, #tpu.memory_space<vmem>>, vector<2x128xf32>
    %c0_5 = arith.constant 0 : index
    %c0_6 = arith.constant 0 : index
    %4 = vector.load %arg2[%c0_5, %c0_6] : memref<32x128xbf16, #tpu.memory_space<vmem>>, vector<32x128xbf16>
    %cst = arith.constant dense<0.000000e+00> : vector<128x16xf32>
    %5 = tpu.matmul %0, %2, %cst {dimension_numbers = #tpu.dot_dimension_numbers<[1], [0], [0], [1], [0, 0, 1, 1], [], []>} : vector<128x128xbf16>, vector<128x16xbf16>, vector<128x16xf32> -> vector<128x16xf32>
    %6 = vector.extract_strided_slice %4 {offsets = [0, 0], sizes = [16, 128], strides = [1, 1]} : vector<32x128xbf16> to vector<16x128xbf16>
    %cst_7 = arith.constant dense<0.000000e+00> : vector<128x128xf32>
    %7 = tpu.matmul %2, %6, %cst_7 {dimension_numbers = #tpu.dot_dimension_numbers<[1], [0], [0], [1], [0, 0, 1, 1], [], []>} : vector<128x16xbf16>, vector<16x128xbf16>, vector<128x128xf32> -> vector<128x128xf32>
    %8 = arith.truncf %5 : vector<128x16xf32> to vector<128x16xbf16>
    %9 = vector.extract_strided_slice %4 {offsets = [16, 0], sizes = [16, 128], strides = [1, 1]} : vector<32x128xbf16> to vector<16x128xbf16>
    %cst_8 = arith.constant dense<0.000000e+00> : vector<128x128xf32>
    %10 = tpu.matmul %8, %9, %cst_8 {dimension_numbers = #tpu.dot_dimension_numbers<[1], [0], [0], [1], [0, 0, 1, 1], [], []>} : vector<128x16xbf16>, vector<16x128xbf16>, vector<128x128xf32> -> vector<128x128xf32>
    %11 = arith.addf %7, %10 : vector<128x128xf32>
    %12 = vector.extract_strided_slice %3 {offsets = [0, 0], sizes = [1, 128], strides = [1, 1]} : vector<2x128xf32> to vector<1x128xf32>
    %13 = vector.broadcast %12 : vector<1x128xf32> to vector<128x128xf32>
    %14 = arith.addf %11, %13 : vector<128x128xf32>
    %cst_9 = arith.constant 0.000000e+00 : f32
    %15 = vector.broadcast %cst_9 : f32 to vector<128x128xf32>
    %16 = arith.maximumf %14, %15 : vector<128x128xf32>
    %17 = arith.truncf %16 : vector<128x128xf32> to vector<128x128xbf16>
    %cst_10 = arith.constant dense<0.000000e+00> : vector<128x128xf32>
    %18 = tpu.matmul %0, %17, %cst_10 {dimension_numbers = #tpu.dot_dimension_numbers<[1], [0], [0], [1], [0, 0, 1, 1], [], []>} : vector<128x128xbf16>, vector<128x128xbf16>, vector<128x128xf32> -> vector<128x128xf32>
    %19 = arith.truncf %18 : vector<128x128xf32> to vector<128x128xbf16>
    %20 = tpu.concatenate %17, %19 in 1 : vector<128x128xbf16>, vector<128x128xbf16> -> vector<128x256xbf16>
    %c0_11 = arith.constant 0 : index
    %c0_12 = arith.constant 0 : index
    %21 = vector.load %arg3[%c0_11, %c0_12] : memref<256x128xbf16, #tpu.memory_space<vmem>>, vector<256x128xbf16>
    %cst_13 = arith.constant dense<0.000000e+00> : vector<128x128xf32>
    %22 = tpu.matmul %20, %21, %cst_13 {dimension_numbers = #tpu.dot_dimension_numbers<[1], [0], [0], [1], [0, 0, 1, 1], [], []>} : vector<128x256xbf16>, vector<256x128xbf16>, vector<128x128xf32> -> vector<128x128xf32>
    %23 = vector.extract_strided_slice %3 {offsets = [1, 0], sizes = [1, 128], strides = [1, 1]} : vector<2x128xf32> to vector<1x128xf32>
    %24 = vector.broadcast %23 : vector<1x128xf32> to vector<128x128xf32>
    %25 = arith.addf %22, %24 : vector<128x128xf32>
    %cst_14 = arith.constant dense<0xFF800000> : vector<128xf32>
    %26 = vector.multi_reduction <maximumf>, %25, %cst_14 [1] : vector<128x128xf32> to vector<128xf32>
    %27 = vector.shape_cast %26 : vector<128xf32> to vector<128x1xf32>
    %28 = vector.broadcast %27 : vector<128x1xf32> to vector<128x128xf32>
    %29 = arith.subf %25, %28 : vector<128x128xf32>
    %30 = math.exp %29 : vector<128x128xf32>
    %cst_15 = arith.constant dense<0.000000e+00> : vector<128xf32>
    %31 = vector.multi_reduction <add>, %30, %cst_15 [1] : vector<128x128xf32> to vector<128xf32>
    %32 = vector.shape_cast %31 : vector<128xf32> to vector<128x1xf32>
    %33 = math.log %32 : vector<128x1xf32>
    %34 = vector.broadcast %33 : vector<128x1xf32> to vector<128x128xf32>
    %35 = arith.subf %29, %34 : vector<128x128xf32>
    %c0_16 = arith.constant 0 : index
    %c0_17 = arith.constant 0 : index
    %36 = vector.load %arg5[%c0_16, %c0_17] : memref<128x128xf32, #tpu.memory_space<vmem>>, vector<128x128xf32>
    tpu.vector_store %arg5[%c0_16, %c0_17], %35 {strides = array<i32>} : memref<128x128xf32, #tpu.memory_space<vmem>>, vector<128x128xf32>,
    return
  }
}

</mosaic_0001>

<llo_original>
// kernel: chebnet_forward.1
$region0: #{chebnet_forward.1}
  #allocation0 [shape = 'u32[]', space=smem, size = 0x4, offset = 0x4, fixed_abs, tag = 'smem constant byte address 0x4 - core index']
  #allocation1 [shape = 'u32[144,128]{1,0:T(1,128)}', space=vmem, size = 0x12000, scoped, tag = 'internal scratch']
  %s0 = inlined_call_operand.vmem [shape: f32[128,16], index: 0, kind: input, shape index: {}]
  %s1 = inlined_call_operand.hbm [shape: bf16[128,128], index: 1, kind: input, shape index: {}]
  %s2 = inlined_call_operand.vmem [shape: bf16[32,128], index: 2, kind: input, shape index: {}]
  %s3 = inlined_call_operand.vmem [shape: bf16[256,128], index: 3, kind: input, shape index: {}]
  %s4 = inlined_call_operand.vmem [shape: f32[2,128], index: 4, kind: input, shape index: {}]
  %s5 = inlined_call_operand.vmem [shape: f32[128,128], index: 5, kind: output, shape index: {}]
  %s6 = sld [smem:[#allocation0]]
  $region34: #{chebnet_forward.1} parent=0
    _
  %s8 = ssub.s32 1, %s6
  %s9 = scalar_select 0, %s8, %s6
  $region1: #{chebnet_forward.1} parent=0
    #allocation2 [shape = 'u8[32768]{0}', space=vmem, size = 0x8000, scoped, tag = 'input window, operand 1, single buffered']
    #allocation3 [shape = 's32[1]{0}', space=sflag, size = 0x4, scoped, tag = 'scoped memory for chebnet_forward.1']
    %10 = vsyncpa [#allocation3], 0
    // Predicated region
    $region2: #{chebnet_forward.1} parent=1 // pred_check
      _
    $region3: #{chebnet_forward.1} parent=1 // pred_check_branch
      %12 = sbr.rel (0) target = $region5
    $region4: #{chebnet_forward.1} parent=1 // pred_region
      _
    $region5: #{chebnet_forward.1} parent=1 // pred_fallthru
      _
    // Predicated region
    $region6: #{chebnet_forward.1} parent=1 // pred_check
      _
    $region7: #{chebnet_forward.1} parent=1 // pred_check_branch
      %14 = sbr.rel (0) target = $region9
    $region8: #{chebnet_forward.1} parent=1 // pred_region
      %s16 = ssub.s32 1024, 1024
      %17 = vsyncadd [#allocation3], %s16
      %s18 = sshll.u32 [#allocation2], 4
      %s19 = int_to_ptr.vmem [resolvable:$true] %s18
      %24 = dma.hbm_to_vmem [thread:$0]  %s1, 1024, %s19, [#allocation3], 64, 64, 4
    $region9: #{chebnet_forward.1} parent=1 // pred_fallthru
      _
    // Predicated region
    $region10: #{chebnet_forward.1} parent=1 // pred_check
      _
    $region11: #{chebnet_forward.1} parent=1 // pred_check_branch
      %26 = sbr.rel (0) target = $region13
    $region12: #{chebnet_forward.1} parent=1 // pred_region
      _
    $region13: #{chebnet_forward.1} parent=1 // pred_fallthru
      _
    // Predicated region
    $region14: #{chebnet_forward.1} parent=1 // pred_check
      _
    $region15: #{chebnet_forward.1} parent=1 // pred_check_branch
      %28 = sbr.rel (0) target = $region17
    $region16: #{chebnet_forward.1} parent=1 // pred_region
      _
    $region17: #{chebnet_forward.1} parent=1 // pred_fallthru
      _
    // Predicated region
    $region18: #{chebnet_forward.1} parent=1 // pred_check
      _
    $region19: #{chebnet_forward.1} parent=1 // pred_check_branch
      %30 = sbr.rel (0) target = $region21
    $region20: #{chebnet_forward.1} parent=1 // pred_region
      _
    $region21: #{chebnet_forward.1} parent=1 // pred_fallthru
      _
    // Predicated region
    $region22: #{chebnet_forward.1} parent=1 // pred_check
      _
    $region23: #{chebnet_forward.1} parent=1 // pred_check_branch
      %32 = sbr.rel (0) target = $region25
    $region24: #{chebnet_forward.1} parent=1 // pred_region
      %33 = dma.done [#allocation3], 1024
    $region25: #{chebnet_forward.1} parent=1 // pred_fallthru
      _
    %v35 = vld [vmem:[#allocation2] sm:$0xf]
    %v36 = vld [vmem:[#allocation2 + $0x4] sm:$0xf]
    %v37 = vld [vmem:[#allocation2 + $0x8] sm:$0xf]
    %v38 = vld [vmem:[#allocation2 + $0xc] sm:$0xf]
    %v39 = vld [vmem:[#allocation2 + $0x10] sm:$0xf]
    %v40 = vld [vmem:[#allocation2 + $0x14] sm:$0xf]
    %v41 = vld [vmem:[#allocation2 + $0x18] sm:$0xf]
    %v42 = vld [vmem:[#allocation2 + $0x1c] sm:$0xf]
    %v43 = vld [vmem:[#allocation2 + $0x20] sm:$0xf]
    %v44 = vld [vmem:[#allocation2 + $0x24] sm:$0xf]
    %v45 = vld [vmem:[#allocation2 + $0x28] sm:$0xf]
    %v46 = vld [vmem:[#allocation2 + $0x2c] sm:$0xf]
    %v47 = vld [vmem:[#allocation2 + $0x30] sm:$0xf]
    %v48 = vld [vmem:[#allocation2 + $0x34] sm:$0xf]
    %v49 = vld [vmem:[#allocation2 + $0x38] sm:$0xf]
    %v50 = vld [vmem:[#allocation2 + $0x3c] sm:$0xf]
    %v51 = vld [vmem:[%s0] sm:$0xff]
    %v52 = vld [vmem:[%s0 + $0x8] sm:$0xff]
    %v53 = vld [vmem:[%s0 + $0x10] sm:$0xff]
    %v54 = vld [vmem:[%s0 + $0x18] sm:$0xff]
    %v55 = vld [vmem:[%s0 + $0x20] sm:$0xff]
    %v56 = vld [vmem:[%s0 + $0x28] sm:$0xff]
    %v57 = vld [vmem:[%s0 + $0x30] sm:$0xff]
    %v58 = vld [vmem:[%s0 + $0x38] sm:$0xff]
    %v59 = vld [vmem:[%s0 + $0x40] sm:$0xff]
    %v60 = vld [vmem:[%s0 + $0x48] sm:$0xff]
    %v61 = vld [vmem:[%s0 + $0x50] sm:$0xff]
    %v62 = vld [vmem:[%s0 + $0x58] sm:$0xff]
    %v63 = vld [vmem:[%s0 + $0x60] sm:$0xff]
    %v64 = vld [vmem:[%s0 + $0x68] sm:$0xff]
    %v65 = vld [vmem:[%s0 + $0x70] sm:$0xff]
    %v66 = vld [vmem:[%s0 + $0x78] sm:$0xff]
    %v67 = vpack.c.bf16 %v52, %v51
    %v68 = vpack.c.bf16 %v54, %v53
    %v69 = vpack.c.bf16 %v56, %v55
    %v70 = vpack.c.bf16 %v58, %v57
    %v71 = vpack.c.bf16 %v60, %v59
    %v72 = vpack.c.bf16 %v62, %v61
    %v73 = vpack.c.bf16 %v64, %v63
    %v74 = vpack.c.bf16 %v66, %v65
    %v75 = vld [vmem:[%s4] sm:$0x3]
    %v76 = vld [vmem:[%s2] sm:$0xf]
    %v77 = vld [vmem:[%s2 + $0x4] sm:$0xf]
    %v78 = vld [vmem:[%s2 + $0x8] sm:$0xf]
    %v79 = vld [vmem:[%s2 + $0xc] sm:$0xf]
    %v96 = vunpack.c.l.b16 %v35
    %v97 = vunpack.c.l.b16 %v36
    %v98 = vunpack.c.l.b16 %v37
    %v99 = vunpack.c.l.b16 %v38
    %v100 = vunpack.c.l.b16 %v39
    %v101 = vunpack.c.l.b16 %v40
    %v102 = vunpack.c.l.b16 %v41
    %v103 = vunpack.c.l.b16 %v42
    %v104 = vunpack.c.l.b16 %v43
    %v105 = vunpack.c.l.b16 %v44
    %v106 = vunpack.c.l.b16 %v45
    %v107 = vunpack.c.l.b16 %v46
    %v108 = vunpack.c.l.b16 %v47
    %v109 = vunpack.c.l.b16 %v48
    %v110 = vunpack.c.l.b16 %v49
    %v111 = vunpack.c.l.b16 %v50
    %v112 = vpack.c.b16 %v97, %v96
    %v113 = vpack.c.b16 %v99, %v98
    %v114 = vpack.c.b16 %v101, %v100
    %v115 = vpack.c.b16 %v103, %v102
    %v116 = vpack.c.b16 %v105, %v104
    %v117 = vpack.c.b16 %v107, %v106
    %v118 = vpack.c.b16 %v109, %v108
    %v119 = vpack.c.b16 %v111, %v110
    %128 = vmatprep.subr.bf16.mxu0 0
    %129 = vmatpush1.bf16.msra.mxu0 %v67
    %130 = vmatprep.subr.bf16.mxu0 0
    %131 = vmatpush1.bf16.msra.mxu0 %v68
    %132 = vmatprep.subr.bf16.mxu0 0
    %133 = vmatpush1.bf16.msra.mxu0 %v69
    %134 = vmatprep.subr.bf16.mxu0 0
    %135 = vmatpush1.bf16.msra.mxu0 %v70
    %136 = vmatprep.subr.bf16.mxu0 0
    %137 = vmatpush1.bf16.msra.mxu0 %v71
    %138 = vmatprep.subr.bf16.mxu0 0
    %139 = vmatpush1.bf16.msra.mxu0 %v72
    %140 = vmatprep.subr.bf16.mxu0 0
    %141 = vmatpush1.bf16.msra.mxu0 %v73
    %142 = vmatprep.subr.bf16.mxu0 0
    %143 = vmatpush1.bf16.msra.mxu0 %v74
    %144 = vmatprep.subr.bf16.mxu0 0
    %145 = vmatpush1.bf16.msra.mxu0 0
    %146 = vmatprep.subr.bf16.mxu0 0
    %147 = vmatpush1.bf16.msra.mxu0 0
    %148 = vmatprep.subr.bf16.mxu0 0
    %149 = vmatpush1.bf16.msra.mxu0 0
    %150 = vmatprep.subr.bf16.mxu0 0
    %151 = vmatpush1.bf16.msra.mxu0 0
    %152 = vmatprep.subr.bf16.mxu0 0
    %153 = vmatpush1.bf16.msra.mxu0 0
    %154 = vmatprep.subr.bf16.mxu0 0
    %155 = vmatpush1.bf16.msra.mxu0 0
    %156 = vmatprep.subr.bf16.mxu0 0
    %157 = vmatpush1.bf16.msra.mxu0 0
    %158 = vmatprep.subr.bf16.mxu0 0
    %159 = vmatpush1.bf16.msra.mxu0 0
    %160 = vmatprep.mubr.bf16.mxu0 0
    %161 = vmatmul.mubr.bf16.gmra.mrb[0].mxu0 %v112
    %v162 = vpop.f32.mrb[0].mxu0
    %v163 = vadd.f32 0.0, %v162
    %v164 = vpop.f32.mrb[0].mxu0
    %v165 = vpop.f32.mrb[0].mxu0
    %v166 = vadd.f32 0.0, %v165
    %v167 = vpop.f32.mrb[0].mxu0
    %168 = vmatprep.mubr.bf16.mxu0 0
    %169 = vmatmul.mubr.bf16.gmra.mrb[0].mxu0 %v113
    %v170 = vpop.f32.mrb[0].mxu0
    %v171 = vadd.f32 0.0, %v170
    %v172 = vpop.f32.mrb[0].mxu0
    %v173 = vpop.f32.mrb[0].mxu0
    %v174 = vadd.f32 0.0, %v173
    %v175 = vpop.f32.mrb[0].mxu0
    %176 = vmatprep.mubr.bf16.mxu0 0
    %177 = vmatmul.mubr.bf16.gmra.mrb[0].mxu0 %v114
    %v178 = vpop.f32.mrb[0].mxu0
    %v179 = vadd.f32 0.0, %v178
    %v180 = vpop.f32.mrb[0].mxu0
    %v181 = vpop.f32.mrb[0].mxu0
    %v182 = vadd.f32 0.0, %v181
    %v183 = vpop.f32.mrb[0].mxu0
    %184 = vmatprep.mubr.bf16.mxu0 0
    %185 = vmatmul.mubr.bf16.gmra.mrb[0].mxu0 %v115
    %v186 = vpop.f32.mrb[0].mxu0
    %v187 = vadd.f32 0.0, %v186
    %v188 = vpop.f32.mrb[0].mxu0
    %v189 = vpop.f32.mrb[0].mxu0
    %v190 = vadd.f32 0.0, %v189
    %v191 = vpop.f32.mrb[0].mxu0
    %192 = vmatprep.mubr.bf16.mxu0 0
    %193 = vmatmul.mubr.bf16.gmra.mrb[0].mxu0 %v116
    %v194 = vpop.f32.mrb[0].mxu0
    %v195 = vadd.f32 0.0, %v194
    %v196 = vpop.f32.mrb[0].mxu0
    %v197 = vpop.f32.mrb[0].mxu0
    %v198 = vadd.f32 0.0, %v197
    %v199 = vpop.f32.mrb[0].mxu0
    %200 = vmatprep.mubr.bf16.mxu0 0
    %201 = vmatmul.mubr.bf16.gmra.mrb[0].mxu0 %v117
    %v202 = vpop.f32.mrb[0].mxu0
    %v203 = vadd.f32 0.0, %v202
    %v204 = vpop.f32.mrb[0].mxu0
    %v205 = vpop.f32.mrb[0].mxu0
    %v206 = vadd.f32 0.0, %v205
    %v207 = vpop.f32.mrb[0].mxu0
    %208 = vmatprep.mubr.bf16.mxu0 0
    %209 = vmatmul.mubr.bf16.gmra.mrb[0].mxu0 %v118
    %v210 = vpop.f32.mrb[0].mxu0
    %v211 = vadd.f32 0.0, %v210
    %v212 = vpop.f32.mrb[0].mxu0
    %v213 = vpop.f32.mrb[0].mxu0
    %v214 = vadd.f32 0.0, %v213
    %v215 = vpop.f32.mrb[0].mxu0
    %216 = vmatprep.mubr.bf16.mxu0 0
    %217 = vmatmul.mubr.bf16.gmra.mrb[0].mxu0 %v119
    %v218 = vpop.f32.mrb[0].mxu0
    %v219 = vadd.f32 0.0, %v218
    %v220 = vpop.f32.mrb[0].mxu0
    %v221 = vpop.f32.mrb[0].mxu0
    %v222 = vadd.f32 0.0, %v221
    %v223 = vpop.f32.mrb[0].mxu0
    %224 = vdwg.mxu0
    %v225 = vpack.c.bf16 %v166, %v163
    %v226 = vpack.c.bf16 %v174, %v171
    %v227 = vpack.c.bf16 %v182, %v179
    %v228 = vpack.c.bf16 %v190, %v187
    %v229 = vpack.c.bf16 %v198, %v195
    %v230 = vpack.c.bf16 %v206, %v203
    %v231 = vpack.c.bf16 %v214, %v211
    %v232 = vpack.c.bf16 %v222, %v219
    %v235 = vunpack.c.l.b16 %v78
    %v236 = vunpack.c.l.b16 %v79
    %v237 = vpack.c.b16 %v236, %v235
    %vm239 = vcmask 130048
    %v241 = vsel %vm239, %v225, 0
    %v244 = vsel %vm239, %v226, 0
    %v247 = vsel %vm239, %v227, 0
    %v250 = vsel %vm239, %v228, 0
    %v253 = vsel %vm239, %v229, 0
    %v256 = vsel %vm239, %v230, 0
    %v259 = vsel %vm239, %v231, 0
    %v262 = vsel %vm239, %v232, 0
    %264 = vmatprep.subr.bf16.mxu0 0
    %265 = vmatpush1.bf16.msra.mxu0 %v237
    %266 = vmatprep.subr.bf16.mxu0 0
    %267 = vmatpush1.bf16.msra.mxu0 0
    %268 = vmatprep.subr.bf16.mxu0 0
    %269 = vmatpush1.bf16.msra.mxu0 0
    %270 = vmatprep.subr.bf16.mxu0 0
    %271 = vmatpush1.bf16.msra.mxu0 0
    %272 = vmatprep.subr.bf16.mxu0 0
    %273 = vmatpush1.bf16.msra.mxu0 0
    %274 = vmatprep.subr.bf16.mxu0 0
    %275 = vmatpush1.bf16.msra.mxu0 0
    %276 = vmatprep.subr.bf16.mxu0 0
    %277 = vmatpush1.bf16.msra.mxu0 0
    %278 = vmatprep.subr.bf16.mxu0 0
    %279 = vmatpush1.bf16.msra.mxu0 0
    %280 = vmatprep.subr.bf16.mxu0 0
    %281 = vmatpush1.bf16.msra.mxu0 0
    %282 = vmatprep.subr.bf16.mxu0 0
    %283 = vmatpush1.bf16.msra.mxu0 0
    %284 = vmatprep.subr.bf16.mxu0 0
    %285 = vmatpush1.bf16.msra.mxu0 0
    %286 = vmatprep.subr.bf16.mxu0 0
    %287 = vmatpush1.bf16.msra.mxu0 0
    %288 = vmatprep.subr.bf16.mxu0 0
    %289 = vmatpush1.bf16.msra.mxu0 0
    %290 = vmatprep.subr.bf16.mxu0 0
    %291 = vmatpush1.bf16.msra.mxu0 0
    %292 = vmatprep.subr.bf16.mxu0 0
    %293 = vmatpush1.bf16.msra.mxu0 0
    %294 = vmatprep.subr.bf16.mxu0 0
    %295 = vmatpush1.bf16.msra.mxu0 0
    %296 = vmatprep.mubr.bf16.mxu0 0
    %297 = vmatmul.mubr.bf16.gmra.mrb[0].mxu0 %v241
    %v298 = vpop.f32.mrb[0].mxu0
    %v299 = vadd.f32 0.0, %v298
    %v300 = vpop.f32.mrb[0].mxu0
    %v301 = vpop.f32.mrb[0].mxu0
    %v302 = vadd.f32 0.0, %v301
    %v303 = vpop.f32.mrb[0].mxu0
    %304 = vmatprep.mubr.bf16.mxu0 0
    %305 = vmatmul.mubr.bf16.gmra.mrb[0].mxu0 %v244
    %v306 = vpop.f32.mrb[0].mxu0
    %v307 = vadd.f32 0.0, %v306
    %v308 = vpop.f32.mrb[0].mxu0
    %v309 = vpop.f32.mrb[0].mxu0
    %v310 = vadd.f32 0.0, %v309
    %v311 = vpop.f32.mrb[0].mxu0
    %312 = vmatprep.mubr.bf16.mxu0 0
    %313 = vmatmul.mubr.bf16.gmra.mrb[0].mxu0 %v247
    %v314 = vpop.f32.mrb[0].mxu0
    %v315 = vadd.f32 0.0, %v314
    %v316 = vpop.f32.mrb[0].mxu0
    %v317 = vpop.f32.mrb[0].mxu0
    %v318 = vadd.f32 0.0, %v317
    %v319 = vpop.f32.mrb[0].mxu0
    %320 = vmatprep.mubr.bf16.mxu0 0
    %321 = vmatmul.mubr.bf16.gmra.mrb[0].mxu0 %v250
    %v322 = vpop.f32.mrb[0].mxu0
    %v323 = vadd.f32 0.0, %v322
    %v324 = vpop.f32.mrb[0].mxu0
    %v325 = vpop.f32.mrb[0].mxu0
    %v326 = vadd.f32 0.0, %v325
    %v327 = vpop.f32.mrb[0].mxu0
    %328 = vmatprep.mubr.bf16.mxu0 0
    %329 = vmatmul.mubr.bf16.gmra.mrb[0].mxu0 %v253
    %v330 = vpop.f32.mrb[0].mxu0
    %v331 = vadd.f32 0.0, %v330
    %v332 = vpop.f32.mrb[0].mxu0
    %v333 = vpop.f32.mrb[0].mxu0
    %v334 = vadd.f32 0.0, %v333
    %v335 = vpop.f32.mrb[0].mxu0
    %336 = vmatprep.mubr.bf16.mxu0 0
    %337 = vmatmul.mubr.bf16.gmra.mrb[0].mxu0 %v256
    %v338 = vpop.f32.mrb[0].mxu0
    %v339 = vadd.f32 0.0, %v338
    %v340 = vpop.f32.mrb[0].mxu0
    %v341 = vpop.f32.mrb[0].mxu0
    %v342 = vadd.f32 0.0, %v341
    %v343 = vpop.f32.mrb[0].mxu0
    %344 = vmatprep.mubr.bf16.mxu0 0
    %345 = vmatmul.mubr.bf16.gmra.mrb[0].mxu0 %v259
    %v346 = vpop.f32.mrb[0].mxu0
    %v347 = vadd.f32 0.0, %v346
    %v348 = vpop.f32.mrb[0].mxu0
    %v349 = vpop.f32.mrb[0].mxu0
    %v350 = vadd.f32 0.0, %v349
    %v351 = vpop.f32.mrb[0].mxu0
    %352 = vmatprep.mubr.bf16.mxu0 0
    %353 = vmatmul.mubr.bf16.gmra.mrb[0].mxu0 %v262
    %v354 = vpop.f32.mrb[0].mxu0
    %v355 = vadd.f32 0.0, %v354
    %v356 = vpop.f32.mrb[0].mxu0
    %v357 = vpop.f32.mrb[0].mxu0
    %v358 = vadd.f32 0.0, %v357
    %v359 = vpop.f32.mrb[0].mxu0
    %360 = vdwg.mxu0
    %v363 = vunpack.c.l.b16 %v76
    %v364 = vunpack.c.l.b16 %v77
    %v365 = vpack.c.b16 %v364, %v363
    %v368 = vsel %vm239, %v67, 0
    %v371 = vsel %vm239, %v68, 0
    %v374 = vsel %vm239, %v69, 0
    %v377 = vsel %vm239, %v70, 0
    %v380 = vsel %vm239, %v71, 0
    %v383 = vsel %vm239, %v72, 0
    %v386 = vsel %vm239, %v73, 0
    %v389 = vsel %vm239, %v74, 0
    %391 = vmatprep.subr.bf16.mxu0 0
    %392 = vmatpush1.bf16.msra.mxu0 %v365
    %393 = vmatprep.subr.bf16.mxu0 0
    %394 = vmatpush1.bf16.msra.mxu0 0
    %395 = vmatprep.subr.bf16.mxu0 0
    %396 = vmatpush1.bf16.msra.mxu0 0
    %397 = vmatprep.subr.bf16.mxu0 0
    %398 = vmatpush1.bf16.msra.mxu0 0
    %399 = vmatprep.subr.bf16.mxu0 0
    %400 = vmatpush1.bf16.msra.mxu0 0
    %401 = vmatprep.subr.bf16.mxu0 0
    %402 = vmatpush1.bf16.msra.mxu0 0
    %403 = vmatprep.subr.bf16.mxu0 0
    %404 = vmatpush1.bf16.msra.mxu0 0
    %405 = vmatprep.subr.bf16.mxu0 0
    %406 = vmatpush1.bf16.msra.mxu0 0
    %407 = vmatprep.subr.bf16.mxu0 0
    %408 = vmatpush1.bf16.msra.mxu0 0
    %409 = vmatprep.subr.bf16.mxu0 0
    %410 = vmatpush1.bf16.msra.mxu0 0
    %411 = vmatprep.subr.bf16.mxu0 0
    %412 = vmatpush1.bf16.msra.mxu0 0
    %413 = vmatprep.subr.bf16.mxu0 0
    %414 = vmatpush1.bf16.msra.mxu0 0
    %415 = vmatprep.subr.bf16.mxu0 0
    %416 = vmatpush1.bf16.msra.mxu0 0
    %417 = vmatprep.subr.bf16.mxu0 0
    %418 = vmatpush1.bf16.msra.mxu0 0
    %419 = vmatprep.subr.bf16.mxu0 0
    %420 = vmatpush1.bf16.msra.mxu0 0
    %421 = vmatprep.subr.bf16.mxu0 0
    %422 = vmatpush1.bf16.msra.mxu0 0
    %423 = vmatprep.mubr.bf16.mxu0 0
    %424 = vmatmul.mubr.bf16.gmra.mrb[0].mxu0 %v368
    %v425 = vpop.f32.mrb[0].mxu0
    %v426 = vadd.f32 %v299, %v425
    %v427 = vpop.f32.mrb[0].mxu0
    %v428 = vpop.f32.mrb[0].mxu0
    %v429 = vadd.f32 %v302, %v428
    %v430 = vpop.f32.mrb[0].mxu0
    %431 = vmatprep.mubr.bf16.mxu0 0
    %432 = vmatmul.mubr.bf16.gmra.mrb[0].mxu0 %v371
    %v433 = vpop.f32.mrb[0].mxu0
    %v434 = vadd.f32 %v307, %v433
    %v435 = vpop.f32.mrb[0].mxu0
    %v436 = vpop.f32.mrb[0].mxu0
    %v437 = vadd.f32 %v310, %v436
    %v438 = vpop.f32.mrb[0].mxu0
    %439 = vmatprep.mubr.bf16.mxu0 0
    %440 = vmatmul.mubr.bf16.gmra.mrb[0].mxu0 %v374
    %v441 = vpop.f32.mrb[0].mxu0
    %v442 = vadd.f32 %v315, %v441
    %v443 = vpop.f32.mrb[0].mxu0
    %v444 = vpop.f32.mrb[0].mxu0
    %v445 = vadd.f32 %v318, %v444
    %v446 = vpop.f32.mrb[0].mxu0
    %447 = vmatprep.mubr.bf16.mxu0 0
    %448 = vmatmul.mubr.bf16.gmra.mrb[0].mxu0 %v377
    %v449 = vpop.f32.mrb[0].mxu0
    %v450 = vadd.f32 %v323, %v449
    %v451 = vpop.f32.mrb[0].mxu0
    %v452 = vpop.f32.mrb[0].mxu0
    %v453 = vadd.f32 %v326, %v452
    %v454 = vpop.f32.mrb[0].mxu0
    %455 = vmatprep.mubr.bf16.mxu0 0
    %456 = vmatmul.mubr.bf16.gmra.mrb[0].mxu0 %v380
    %v457 = vpop.f32.mrb[0].mxu0
    %v458 = vadd.f32 %v331, %v457
    %v459 = vpop.f32.mrb[0].mxu0
    %v460 = vpop.f32.mrb[0].mxu0
    %v461 = vadd.f32 %v334, %v460
    %v462 = vpop.f32.mrb[0].mxu0
    %463 = vmatprep.mubr.bf16.mxu0 0
    %464 = vmatmul.mubr.bf16.gmra.mrb[0].mxu0 %v383
    %v465 = vpop.f32.mrb[0].mxu0
    %v466 = vadd.f32 %v339, %v465
    %v467 = vpop.f32.mrb[0].mxu0
    %v468 = vpop.f32.mrb[0].mxu0
    %v469 = vadd.f32 %v342, %v468
    %v470 = vpop.f32.mrb[0].mxu0
    %471 = vmatprep.mubr.bf16.mxu0 0
    %472 = vmatmul.mubr.bf16.gmra.mrb[0].mxu0 %v386
    %v473 = vpop.f32.mrb[0].mxu0
    %v474 = vadd.f32 %v347, %v473
    %v475 = vpop.f32.mrb[0].mxu0
    %v476 = vpop.f32.mrb[0].mxu0
    %v477 = vadd.f32 %v350, %v476
    %v478 = vpop.f32.mrb[0].mxu0
    %479 = vmatprep.mubr.bf16.mxu0 0
    %480 = vmatmul.mubr.bf16.gmra.mrb[0].mxu0 %v389
    %v481 = vpop.f32.mrb[0].mxu0
    %v482 = vadd.f32 %v355, %v481
    %v483 = vpop.f32.mrb[0].mxu0
    %v484 = vpop.f32.mrb[0].mxu0
    %v485 = vadd.f32 %v358, %v484
    %v486 = vpop.f32.mrb[0].mxu0
    %487 = vdwg.mxu0
    %v488 = vlaneseq
    %v489 = vshrl.u32 %v488, 7
    %v490 = vsub.s32 0, %v489
    %v491 = vrot.slane %v75, %v490
    %v492 = vadd.f32 %v426, %v491
    %v493 = vadd.f32 %v429, %v491
    %v494 = vadd.f32 %v434, %v491
    %v495 = vadd.f32 %v437, %v491
    %v496 = vadd.f32 %v442, %v491
    %v497 = vadd.f32 %v445, %v491
    %v498 = vadd.f32 %v450, %v491
    %v499 = vadd.f32 %v453, %v491
    %v500 = vadd.f32 %v458, %v491
    %v501 = vadd.f32 %v461, %v491
    %v502 = vadd.f32 %v466, %v491
    %v503 = vadd.f32 %v469, %v491
    %v504 = vadd.f32 %v474, %v491
    %v505 = vadd.f32 %v477, %v491
    %v506 = vadd.f32 %v482, %v491
    %v507 = vadd.f32 %v485, %v491
    %v508 = vmax.f32 %v492, 0.0
    %v509 = vmax.f32 %v493, 0.0
    %v510 = vmax.f32 %v494, 0.0
    %v511 = vmax.f32 %v495, 0.0
    %v512 = vmax.f32 %v496, 0.0
    %v513 = vmax.f32 %v497, 0.0
    %v514 = vmax.f32 %v498, 0.0
    %v515 = vmax.f32 %v499, 0.0
    %v516 = vmax.f32 %v500, 0.0
    %v517 = vmax.f32 %v501, 0.0
    %v518 = vmax.f32 %v502, 0.0
    %v519 = vmax.f32 %v503, 0.0
    %v520 = vmax.f32 %v504, 0.0
    %v521 = vmax.f32 %v505, 0.0
    %v522 = vmax.f32 %v506, 0.0
    %v523 = vmax.f32 %v507, 0.0
    %v524 = vpack.c.bf16 %v509, %v508
    %v525 = vpack.c.bf16 %v511, %v510
    %v526 = vpack.c.bf16 %v513, %v512
    %v527 = vpack.c.bf16 %v515, %v514
    %v528 = vpack.c.bf16 %v517, %v516
    %v529 = vpack.c.bf16 %v519, %v518
    %v530 = vpack.c.bf16 %v521, %v520
    %v531 = vpack.c.bf16 %v523, %v522
    %532 = vmatprep.subr.bf16.mxu0 0
    %533 = vmatpush1.bf16.msra.mxu0 %v524
    %534 = vmatprep.subr.bf16.mxu0 0
    %535 = vmatpush1.bf16.msra.mxu0 %v525
    %536 = vmatprep.subr.bf16.mxu0 0
    %537 = vmatpush1.bf16.msra.mxu0 %v526
    %538 = vmatprep.subr.bf16.mxu0 0
    %539 = vmatpush1.bf16.msra.mxu0 %v527
    %540 = vmatprep.subr.bf16.mxu0 0
    %541 = vmatpush1.bf16.msra.mxu0 %v528
    %542 = vmatprep.subr.bf16.mxu0 0
    %543 = vmatpush1.bf16.msra.mxu0 %v529
    %544 = vmatprep.subr.bf16.mxu0 0
    %545 = vmatpush1.bf16.msra.mxu0 %v530
    %546 = vmatprep.subr.bf16.mxu0 0
    %547 = vmatpush1.bf16.msra.mxu0 %v531
    %548 = vmatprep.subr.bf16.mxu0 0
    %549 = vmatpush1.bf16.msra.mxu0 0
    %550 = vmatprep.subr.bf16.mxu0 0
    %551 = vmatpush1.bf16.msra.mxu0 0
    %552 = vmatprep.subr.bf16.mxu0 0
    %553 = vmatpush1.bf16.msra.mxu0 0
    %554 = vmatprep.subr.bf16.mxu0 0
    %555 = vmatpush1.bf16.msra.mxu0 0
    %556 = vmatprep.subr.bf16.mxu0 0
    %557 = vmatpush1.bf16.msra.mxu0 0
    %558 = vmatprep.subr.bf16.mxu0 0
    %559 = vmatpush1.bf16.msra.mxu0 0
    %560 = vmatprep.subr.bf16.mxu0 0
    %561 = vmatpush1.bf16.msra.mxu0 0
    %562 = vmatprep.subr.bf16.mxu0 0
    %563 = vmatpush1.bf16.msra.mxu0 0
    %564 = vmatprep.mubr.bf16.mxu0 0
    %565 = vmatmul.mubr.bf16.gmra.mrb[0].mxu0 %v112
    %v566 = vpop.f32.mrb[0].mxu0
    %v567 = vadd.f32 0.0, %v566
    %v568 = vpop.f32.mrb[0].mxu0
    %v569 = vpop.f32.mrb[0].mxu0
    %v570 = vadd.f32 0.0, %v569
    %v571 = vpop.f32.mrb[0].mxu0
    %572 = vmatprep.mubr.bf16.mxu0 0
    %573 = vmatmul.mubr.bf16.gmra.mrb[0].mxu0 %v113
    %v574 = vpop.f32.mrb[0].mxu0
    %v575 = vadd.f32 0.0, %v574
    %v576 = vpop.f32.mrb[0].mxu0
    %v577 = vpop.f32.mrb[0].mxu0
    %v578 = vadd.f32 0.0, %v577
    %v579 = vpop.f32.mrb[0].mxu0
    %580 = vmatprep.mubr.bf16.mxu0 0
    %581 = vmatmul.mubr.bf16.gmra.mrb[0].mxu0 %v114
    %v582 = vpop.f32.mrb[0].mxu0
    %v583 = vadd.f32 0.0, %v582
    %v584 = vpop.f32.mrb[0].mxu0
    %v585 = vpop.f32.mrb[0].mxu0
    %v586 = vadd.f32 0.0, %v585
    %v587 = vpop.f32.mrb[0].mxu0
    %588 = vmatprep.mubr.bf16.mxu0 0
    %589 = vmatmul.mubr.bf16.gmra.mrb[0].mxu0 %v115
    %v590 = vpop.f32.mrb[0].mxu0
    %v591 = vadd.f32 0.0, %v590
    %v592 = vpop.f32.mrb[0].mxu0
    %v593 = vpop.f32.mrb[0].mxu0
    %v594 = vadd.f32 0.0, %v593
    %v595 = vpop.f32.mrb[0].mxu0
    %596 = vmatprep.mubr.bf16.mxu0 0
    %597 = vmatmul.mubr.bf16.gmra.mrb[0].mxu0 %v116
    %v598 = vpop.f32.mrb[0].mxu0
    %v599 = vadd.f32 0.0, %v598
    %v600 = vpop.f32.mrb[0].mxu0
    %v601 = vpop.f32.mrb[0].mxu0
    %v602 = vadd.f32 0.0, %v601
    %v603 = vpop.f32.mrb[0].mxu0
    %604 = vmatprep.mubr.bf16.mxu0 0
    %605 = vmatmul.mubr.bf16.gmra.mrb[0].mxu0 %v117
    %v606 = vpop.f32.mrb[0].mxu0
    %v607 = vadd.f32 0.0, %v606
    %v608 = vpop.f32.mrb[0].mxu0
    %v609 = vpop.f32.mrb[0].mxu0
    %v610 = vadd.f32 0.0, %v609
    %v611 = vpop.f32.mrb[0].mxu0
    %612 = vmatprep.mubr.bf16.mxu0 0
    %613 = vmatmul.mubr.bf16.gmra.mrb[0].mxu0 %v118
    %v614 = vpop.f32.mrb[0].mxu0
    %v615 = vadd.f32 0.0, %v614
    %v616 = vpop.f32.mrb[0].mxu0
    %v617 = vpop.f32.mrb[0].mxu0
    %v618 = vadd.f32 0.0, %v617
    %v619 = vpop.f32.mrb[0].mxu0
    %620 = vmatprep.mubr.bf16.mxu0 0
    %621 = vmatmul.mubr.bf16.gmra.mrb[0].mxu0 %v119
    %v622 = vpop.f32.mrb[0].mxu0
    %v623 = vadd.f32 0.0, %v622
    %v624 = vpop.f32.mrb[0].mxu0
    %v625 = vpop.f32.mrb[0].mxu0
    %v626 = vadd.f32 0.0, %v625
    %v627 = vpop.f32.mrb[0].mxu0
    %628 = vdwg.mxu0
    %v629 = vpack.c.bf16 %v570, %v567
    %v630 = vpack.c.bf16 %v578, %v575
    %v631 = vpack.c.bf16 %v586, %v583
    %v632 = vpack.c.bf16 %v594, %v591
    %v633 = vpack.c.bf16 %v602, %v599
    %v634 = vpack.c.bf16 %v610, %v607
    %v635 = vpack.c.bf16 %v618, %v615
    %v636 = vpack.c.bf16 %v626, %v623
    %v637 = vld [vmem:[%s3] sm:$0xf]
    %v638 = vld [vmem:[%s3 + $0x4] sm:$0xf]
    %v639 = vld [vmem:[%s3 + $0x8] sm:$0xf]
    %v640 = vld [vmem:[%s3 + $0xc] sm:$0xf]
    %v641 = vld [vmem:[%s3 + $0x10] sm:$0xf]
    %v642 = vld [vmem:[%s3 + $0x14] sm:$0xf]
    %v643 = vld [vmem:[%s3 + $0x18] sm:$0xf]
    %v644 = vld [vmem:[%s3 + $0x1c] sm:$0xf]
    %v645 = vld [vmem:[%s3 + $0x20] sm:$0xf]
    %v646 = vld [vmem:[%s3 + $0x24] sm:$0xf]
    %v647 = vld [vmem:[%s3 + $0x28] sm:$0xf]
    %v648 = vld [vmem:[%s3 + $0x2c] sm:$0xf]
    %v649 = vld [vmem:[%s3 + $0x30] sm:$0xf]
    %v650 = vld [vmem:[%s3 + $0x34] sm:$0xf]
    %v651 = vld [vmem:[%s3 + $0x38] sm:$0xf]
    %v652 = vld [vmem:[%s3 + $0x3c] sm:$0xf]
    %v653 = vld [vmem:[%s3 + $0x40] sm:$0xf]
    %v654 = vld [vmem:[%s3 + $0x44] sm:$0xf]
    %v655 = vld [vmem:[%s3 + $0x48] sm:$0xf]
    %v656 = vld [vmem:[%s3 + $0x4c] sm:$0xf]
    %v657 = vld [vmem:[%s3 + $0x50] sm:$0xf]
    %v658 = vld [vmem:[%s3 + $0x54] sm:$0xf]
    %v659 = vld [vmem:[%s3 + $0x58] sm:$0xf]
    %v660 = vld [vmem:[%s3 + $0x5c] sm:$0xf]
    %v661 = vld [vmem:[%s3 + $0x60] sm:$0xf]
    %v662 = vld [vmem:[%s3 + $0x64] sm:$0xf]
    %v663 = vld [vmem:[%s3 + $0x68] sm:$0xf]
    %v664 = vld [vmem:[%s3 + $0x6c] sm:$0xf]
    %v665 = vld [vmem:[%s3 + $0x70] sm:$0xf]
    %v666 = vld [vmem:[%s3 + $0x74] sm:$0xf]
    %v667 = vld [vmem:[%s3 + $0x78] sm:$0xf]
    %v668 = vld [vmem:[%s3 + $0x7c] sm:$0xf]
    %v669 = vlaneseq
    %v670 = vshrl.u32 %v669, 7
    %v671 = vsub.s32 1, %v670
    %v672 = vrot.slane %v75, %v671
    %v705 = vunpack.c.l.b16 %v637
    %v706 = vunpack.c.l.b16 %v638
    %v707 = vunpack.c.l.b16 %v639
    %v708 = vunpack.c.l.b16 %v640
    %v709 = vunpack.c.l.b16 %v641
    %v710 = vunpack.c.l.b16 %v642
    %v711 = vunpack.c.l.b16 %v643
    %v712 = vunpack.c.l.b16 %v644
    %v713 = vunpack.c.l.b16 %v645
    %v714 = vunpack.c.l.b16 %v646
    %v715 = vunpack.c.l.b16 %v647
    %v716 = vunpack.c.l.b16 %v648
    %v717 = vunpack.c.l.b16 %v649
    %v718 = vunpack.c.l.b16 %v650
    %v719 = vunpack.c.l.b16 %v651
    %v720 = vunpack.c.l.b16 %v652
    %v721 = vunpack.c.l.b16 %v653
    %v722 = vunpack.c.l.b16 %v654
    %v723 = vunpack.c.l.b16 %v655
    %v724 = vunpack.c.l.b16 %v656
    %v725 = vunpack.c.l.b16 %v657
    %v726 = vunpack.c.l.b16 %v658
    %v727 = vunpack.c.l.b16 %v659
    %v728 = vunpack.c.l.b16 %v660
    %v729 = vunpack.c.l.b16 %v661
    %v730 = vunpack.c.l.b16 %v662
    %v731 = vunpack.c.l.b16 %v663
    %v732 = vunpack.c.l.b16 %v664
    %v733 = vunpack.c.l.b16 %v665
    %v734 = vunpack.c.l.b16 %v666
    %v735 = vunpack.c.l.b16 %v667
    %v736 = vunpack.c.l.b16 %v668
    %v737 = vpack.c.b16 %v706, %v705
    %v738 = vpack.c.b16 %v708, %v707
    %v739 = vpack.c.b16 %v710, %v709
    %v740 = vpack.c.b16 %v712, %v711
    %v741 = vpack.c.b16 %v714, %v713
    %v742 = vpack.c.b16 %v716, %v715
    %v743 = vpack.c.b16 %v718, %v717
    %v744 = vpack.c.b16 %v720, %v719
    %v745 = vpack.c.b16 %v722, %v721
    %v746 = vpack.c.b16 %v724, %v723
    %v747 = vpack.c.b16 %v726, %v725
    %v748 = vpack.c.b16 %v728, %v727
    %v749 = vpack.c.b16 %v730, %v729
    %v750 = vpack.c.b16 %v732, %v731
    %v751 = vpack.c.b16 %v734, %v733
    %v752 = vpack.c.b16 %v736, %v735
    %769 = vmatprep.subr.bf16.mxu0 0
    %770 = vmatpush1.bf16.msra.mxu0 %v737
    %771 = vmatprep.subr.bf16.mxu0 0
    %772 = vmatpush1.bf16.msra.mxu0 %v738
    %773 = vmatprep.subr.bf16.mxu0 0
    %774 = vmatpush1.bf16.msra.mxu0 %v739
    %775 = vmatprep.subr.bf16.mxu0 0
    %776 = vmatpush1.bf16.msra.mxu0 %v740
    %777 = vmatprep.subr.bf16.mxu0 0
    %778 = vmatpush1.bf16.msra.mxu0 %v741
    %779 = vmatprep.subr.bf16.mxu0 0
    %780 = vmatpush1.bf16.msra.mxu0 %v742
    %781 = vmatprep.subr.bf16.mxu0 0
    %782 = vmatpush1.bf16.msra.mxu0 %v743
    %783 = vmatprep.subr.bf16.mxu0 0
    %784 = vmatpush1.bf16.msra.mxu0 %v744
    %785 = vmatprep.subr.bf16.mxu0 0
    %786 = vmatpush1.bf16.msra.mxu0 %v745
    %787 = vmatprep.subr.bf16.mxu0 0
    %788 = vmatpush1.bf16.msra.mxu0 %v746
    %789 = vmatprep.subr.bf16.mxu0 0
    %790 = vmatpush1.bf16.msra.mxu0 %v747
    %791 = vmatprep.subr.bf16.mxu0 0
    %792 = vmatpush1.bf16.msra.mxu0 %v748
    %793 = vmatprep.subr.bf16.mxu0 0
    %794 = vmatpush1.bf16.msra.mxu0 %v749
    %795 = vmatprep.subr.bf16.mxu0 0
    %796 = vmatpush1.bf16.msra.mxu0 %v750
    %797 = vmatprep.subr.bf16.mxu0 0
    %798 = vmatpush1.bf16.msra.mxu0 %v751
    %799 = vmatprep.subr.bf16.mxu0 0
    %800 = vmatpush1.bf16.msra.mxu0 %v752
    %801 = vmatprep.mubr.bf16.mxu0 %v629
    %802 = vmatmul.mubr.bf16.gmra.mrb[0].mxu0 %v524
    %v803 = vpop.f32.mrb[0].mxu0
    %v804 = vadd.f32 %v672, %v803
    %v805 = vpop.f32.mrb[0].mxu0
    %v806 = vpop.f32.mrb[0].mxu0
    %v807 = vadd.f32 %v672, %v806
    %v808 = vpop.f32.mrb[0].mxu0
    %809 = vmatprep.mubr.bf16.mxu0 %v630
    %810 = vmatmul.mubr.bf16.gmra.mrb[0].mxu0 %v525
    %v811 = vpop.f32.mrb[0].mxu0
    %v812 = vadd.f32 %v672, %v811
    %v813 = vpop.f32.mrb[0].mxu0
    %v814 = vpop.f32.mrb[0].mxu0
    %v815 = vadd.f32 %v672, %v814
    %v816 = vpop.f32.mrb[0].mxu0
    %817 = vmatprep.mubr.bf16.mxu0 %v631
    %818 = vmatmul.mubr.bf16.gmra.mrb[0].mxu0 %v526
    %v819 = vpop.f32.mrb[0].mxu0
    %v820 = vadd.f32 %v672, %v819
    %v821 = vpop.f32.mrb[0].mxu0
    %v822 = vpop.f32.mrb[0].mxu0
    %v823 = vadd.f32 %v672, %v822
    %v824 = vpop.f32.mrb[0].mxu0
    %825 = vmatprep.mubr.bf16.mxu0 %v632
    %826 = vmatmul.mubr.bf16.gmra.mrb[0].mxu0 %v527
    %v827 = vpop.f32.mrb[0].mxu0
    %v828 = vadd.f32 %v672, %v827
    %v829 = vpop.f32.mrb[0].mxu0
    %v830 = vpop.f32.mrb[0].mxu0
    %v831 = vadd.f32 %v672, %v830
    %v832 = vpop.f32.mrb[0].mxu0
    %833 = vmatprep.mubr.bf16.mxu0 %v633
    %834 = vmatmul.mubr.bf16.gmra.mrb[0].mxu0 %v528
    %v835 = vpop.f32.mrb[0].mxu0
    %v836 = vadd.f32 %v672, %v835
    %v837 = vpop.f32.mrb[0].mxu0
    %v838 = vpop.f32.mrb[0].mxu0
    %v839 = vadd.f32 %v672, %v838
    %v840 = vpop.f32.mrb[0].mxu0
    %841 = vmatprep.mubr.bf16.mxu0 %v634
    %842 = vmatmul.mubr.bf16.gmra.mrb[0].mxu0 %v529
    %v843 = vpop.f32.mrb[0].mxu0
    %v844 = vadd.f32 %v672, %v843
    %v845 = vpop.f32.mrb[0].mxu0
    %v846 = vpop.f32.mrb[0].mxu0
    %v847 = vadd.f32 %v672, %v846
    %v848 = vpop.f32.mrb[0].mxu0
    %849 = vmatprep.mubr.bf16.mxu0 %v635
    %850 = vmatmul.mubr.bf16.gmra.mrb[0].mxu0 %v530
    %v851 = vpop.f32.mrb[0].mxu0
    %v852 = vadd.f32 %v672, %v851
    %v853 = vpop.f32.mrb[0].mxu0
    %v854 = vpop.f32.mrb[0].mxu0
    %v855 = vadd.f32 %v672, %v854
    %v856 = vpop.f32.mrb[0].mxu0
    %857 = vmatprep.mubr.bf16.mxu0 %v636
    %858 = vmatmul.mubr.bf16.gmra.mrb[0].mxu0 %v531
    %v859 = vpop.f32.mrb[0].mxu0
    %v860 = vadd.f32 %v672, %v859
    %v861 = vpop.f32.mrb[0].mxu0
    %v862 = vpop.f32.mrb[0].mxu0
    %v863 = vadd.f32 %v672, %v862
    %v864 = vpop.f32.mrb[0].mxu0
    %865 = vdwg.mxu0
    %866 = vmax.xlane.f32.xlu0 %v804
    %v867 = vpop.xlane.xlu0 %866
    %868 = vmax.xlane.f32.xlu0 %v807
    %v869 = vpop.xlane.xlu0 %868
    %870 = vmax.xlane.f32.xlu0 %v812
    %v871 = vpop.xlane.xlu0 %870
    %872 = vmax.xlane.f32.xlu0 %v815
    %v873 = vpop.xlane.xlu0 %872
    %874 = vmax.xlane.f32.xlu0 %v820
    %v875 = vpop.xlane.xlu0 %874
    %876 = vmax.xlane.f32.xlu0 %v823
    %v877 = vpop.xlane.xlu0 %876
    %878 = vmax.xlane.f32.xlu0 %v828
    %v879 = vpop.xlane.xlu0 %878
    %880 = vmax.xlane.f32.xlu0 %v831
    %v881 = vpop.xlane.xlu0 %880
    %882 = vmax.xlane.f32.xlu0 %v836
    %v883 = vpop.xlane.xlu0 %882
    %884 = vmax.xlane.f32.xlu0 %v839
    %v885 = vpop.xlane.xlu0 %884
    %886 = vmax.xlane.f32.xlu0 %v844
    %v887 = vpop.xlane.xlu0 %886
    %888 = vmax.xlane.f32.xlu0 %v847
    %v889 = vpop.xlane.xlu0 %888
    %890 = vmax.xlane.f32.xlu0 %v852
    %v891 = vpop.xlane.xlu0 %890
    %892 = vmax.xlane.f32.xlu0 %v855
    %v893 = vpop.xlane.xlu0 %892
    %894 = vmax.xlane.f32.xlu0 %v860
    %v895 = vpop.xlane.xlu0 %894
    %896 = vmax.xlane.f32.xlu0 %v863
    %v897 = vpop.xlane.xlu0 %896
    %v898 = vsub.f32 %v804, %v867
    %v899 = vsub.f32 %v807, %v869
    %v900 = vsub.f32 %v812, %v871
    %v901 = vsub.f32 %v815, %v873
    %v902 = vsub.f32 %v820, %v875
    %v903 = vsub.f32 %v823, %v877
    %v904 = vsub.f32 %v828, %v879
    %v905 = vsub.f32 %v831, %v881
    %v906 = vsub.f32 %v836, %v883
    %v907 = vsub.f32 %v839, %v885
    %v908 = vsub.f32 %v844, %v887
    %v909 = vsub.f32 %v847, %v889
    %v910 = vsub.f32 %v852, %v891
    %v911 = vsub.f32 %v855, %v893
    %v912 = vsub.f32 %v860, %v895
    %v913 = vsub.f32 %v863, %v897
    %v914 = vmul.f32 %v898, 1.442695
    %v915 = vpow.pop %v914
    %v916 = vmul.f32 %v899, 1.442695
    %v917 = vpow.pop %v916
    %v918 = vmul.f32 %v900, 1.442695
    %v919 = vpow.pop %v918
    %v920 = vmul.f32 %v901, 1.442695
    %v921 = vpow.pop %v920
    %v922 = vmul.f32 %v902, 1.442695
    %v923 = vpow.pop %v922
    %v924 = vmul.f32 %v903, 1.442695
    %v925 = vpow.pop %v924
    %v926 = vmul.f32 %v904, 1.442695
    %v927 = vpow.pop %v926
    %v928 = vmul.f32 %v905, 1.442695
    %v929 = vpow.pop %v928
    %v930 = vmul.f32 %v906, 1.442695
    %v931 = vpow.pop %v930
    %v932 = vmul.f32 %v907, 1.442695
    %v933 = vpow.pop %v932
    %v934 = vmul.f32 %v908, 1.442695
    %v935 = vpow.pop %v934
    %v936 = vmul.f32 %v909, 1.442695
    %v937 = vpow.pop %v936
    %v938 = vmul.f32 %v910, 1.442695
    %v939 = vpow.pop %v938
    %v940 = vmul.f32 %v911, 1.442695
    %v941 = vpow.pop %v940
    %v942 = vmul.f32 %v912, 1.442695
    %v943 = vpow.pop %v942
    %v944 = vmul.f32 %v913, 1.442695
    %v945 = vpow.pop %v944
    %946 = vadd.xlane.f32.xlu0 %v915
    %v947 = vpop.xlane.xlu0 %946
    %948 = vadd.xlane.f32.xlu0 %v917
    %v949 = vpop.xlane.xlu0 %948
    %950 = vadd.xlane.f32.xlu0 %v919
    %v951 = vpop.xlane.xlu0 %950
    %952 = vadd.xlane.f32.xlu0 %v921
    %v953 = vpop.xlane.xlu0 %952
    %954 = vadd.xlane.f32.xlu0 %v923
    %v955 = vpop.xlane.xlu0 %954
    %956 = vadd.xlane.f32.xlu0 %v925
    %v957 = vpop.xlane.xlu0 %956
    %958 = vadd.xlane.f32.xlu0 %v927
    %v959 = vpop.xlane.xlu0 %958
    %960 = vadd.xlane.f32.xlu0 %v929
    %v961 = vpop.xlane.xlu0 %960
    %962 = vadd.xlane.f32.xlu0 %v931
    %v963 = vpop.xlane.xlu0 %962
    %964 = vadd.xlane.f32.xlu0 %v933
    %v965 = vpop.xlane.xlu0 %964
    %966 = vadd.xlane.f32.xlu0 %v935
    %v967 = vpop.xlane.xlu0 %966
    %968 = vadd.xlane.f32.xlu0 %v937
    %v969 = vpop.xlane.xlu0 %968
    %970 = vadd.xlane.f32.xlu0 %v939
    %v971 = vpop.xlane.xlu0 %970
    %972 = vadd.xlane.f32.xlu0 %v941
    %v973 = vpop.xlane.xlu0 %972
    %974 = vadd.xlane.f32.xlu0 %v943
    %v975 = vpop.xlane.xlu0 %974
    %976 = vadd.xlane.f32.xlu0 %v945
    %v977 = vpop.xlane.xlu0 %976
    %v978 = vlog2.pop %v947
    %v979 = vmul.f32 %v978, 0.6931472
    %v980 = vlog2.pop %v949
    %v981 = vmul.f32 %v980, 0.6931472
    %v982 = vlog2.pop %v951
    %v983 = vmul.f32 %v982, 0.6931472
    %v984 = vlog2.pop %v953
    %v985 = vmul.f32 %v984, 0.6931472
    %v986 = vlog2.pop %v955
    %v987 = vmul.f32 %v986, 0.6931472
    %v988 = vlog2.pop %v957
    %v989 = vmul.f32 %v988, 0.6931472
    %v990 = vlog2.pop %v959
    %v991 = vmul.f32 %v990, 0.6931472
    %v992 = vlog2.pop %v961
    %v993 = vmul.f32 %v992, 0.6931472
    %v994 = vlog2.pop %v963
    %v995 = vmul.f32 %v994, 0.6931472
    %v996 = vlog2.pop %v965
    %v997 = vmul.f32 %v996, 0.6931472
    %v998 = vlog2.pop %v967
    %v999 = vmul.f32 %v998, 0.6931472
    %v1000 = vlog2.pop %v969
    %v1001 = vmul.f32 %v1000, 0.6931472
    %v1002 = vlog2.pop %v971
    %v1003 = vmul.f32 %v1002, 0.6931472
    %v1004 = vlog2.pop %v973
    %v1005 = vmul.f32 %v1004, 0.6931472
    %v1006 = vlog2.pop %v975
    %v1007 = vmul.f32 %v1006, 0.6931472
    %v1008 = vlog2.pop %v977
    %v1009 = vmul.f32 %v1008, 0.6931472
    %v1010 = vsub.f32 %v898, %v979
    %v1011 = vsub.f32 %v899, %v981
    %v1012 = vsub.f32 %v900, %v983
    %v1013 = vsub.f32 %v901, %v985
    %v1014 = vsub.f32 %v902, %v987
    %v1015 = vsub.f32 %v903, %v989
    %v1016 = vsub.f32 %v904, %v991
    %v1017 = vsub.f32 %v905, %v993
    %v1018 = vsub.f32 %v906, %v995
    %v1019 = vsub.f32 %v907, %v997
    %v1020 = vsub.f32 %v908, %v999
    %v1021 = vsub.f32 %v909, %v1001
    %v1022 = vsub.f32 %v910, %v1003
    %v1023 = vsub.f32 %v911, %v1005
    %v1024 = vsub.f32 %v912, %v1007
    %v1025 = vsub.f32 %v913, %v1009
    %1026 = vst [vmem:[%s5] sm:$0xff] %v1010
    %1027 = vst [vmem:[%s5 + $0x8] sm:$0xff] %v1011
    %1028 = vst [vmem:[%s5 + $0x10] sm:$0xff] %v1012
    %1029 = vst [vmem:[%s5 + $0x18] sm:$0xff] %v1013
    %1030 = vst [vmem:[%s5 + $0x20] sm:$0xff] %v1014
    %1031 = vst [vmem:[%s5 + $0x28] sm:$0xff] %v1015
    %1032 = vst [vmem:[%s5 + $0x30] sm:$0xff] %v1016
    %1033 = vst [vmem:[%s5 + $0x38] sm:$0xff] %v1017
    %1034 = vst [vmem:[%s5 + $0x40] sm:$0xff] %v1018
    %1035 = vst [vmem:[%s5 + $0x48] sm:$0xff] %v1019
    %1036 = vst [vmem:[%s5 + $0x50] sm:$0xff] %v1020
    %1037 = vst [vmem:[%s5 + $0x58] sm:$0xff] %v1021
    %1038 = vst [vmem:[%s5 + $0x60] sm:$0xff] %v1022
    %1039 = vst [vmem:[%s5 + $0x68] sm:$0xff] %v1023
    %1040 = vst [vmem:[%s5 + $0x70] sm:$0xff] %v1024
    %1041 = vst [vmem:[%s5 + $0x78] sm:$0xff] %v1025
    // Predicated region
    $region26: #{chebnet_forward.1} parent=1 // pred_check
      _
    $region27: #{chebnet_forward.1} parent=1 // pred_check_branch
      %1043 = sbr.rel (0) target = $region29
    $region28: #{chebnet_forward.1} parent=1 // pred_region
      _
    $region29: #{chebnet_forward.1} parent=1 // pred_fallthru
      _
    // Predicated region
    $region30: #{chebnet_forward.1} parent=1 // pred_check
      _
    $region31: #{chebnet_forward.1} parent=1 // pred_check_branch
      %1045 = sbr.rel (0) target = $region33
    $region32: #{chebnet_forward.1} parent=1 // pred_region
      _
    $region33: #{chebnet_forward.1} parent=1 // pred_fallthru
      _
    %1046 = vsyncpa [#allocation3], 1

</llo_original>
